<compile_context>
chip_gen: v7x
topology: tpu7x:2x2x1
jax: 0.10.0
libtpu: 0.0.40
codegen_flags: <defaults>
</compile_context>

<pallas_src>
import math
from functools import partial

import jax
import jax.numpy as jnp
import numpy as np
from jax.experimental import pallas as pl
from jax.experimental.pallas import tpu as pltpu

_LANE = 128
_MAX_LANES = 1024  # lane-width cap: 1024 lanes * 4 B = 4 KiB per f32 row


# ---------------------------------------------------------------------------
# Primary path: true no-op (caller donates x).
# ---------------------------------------------------------------------------
def _identity_alias_kernel(x_hbm_ref, o_hbm_ref):  # noqa: ARG001 (refs unused)
    # Output aliases the input buffer (input_output_aliases={0: 0}); the bytes
    # are already where they need to be, so there is nothing to compute and
    # nothing to DMA.  Intentionally empty.
    pass


@partial(jax.jit, donate_argnums=0)
def clsf_model_forward(x):
    """ClsfModel.forward (identity) as a zero-HBM-traffic Pallas call.

    NOTE: x is donated; its device buffer becomes the output buffer.  Callers
    must not reuse x afterwards (compare results against a host copy).
    """
    return pl.pallas_call(
        _identity_alias_kernel,
        out_shape=jax.ShapeDtypeStruct(x.shape, x.dtype),
        in_specs=[pl.BlockSpec(memory_space=pl.ANY)],
        out_specs=pl.BlockSpec(memory_space=pl.ANY),
        input_output_aliases={0: 0},
        cost_estimate=pl.CostEstimate(flops=0, transcendentals=0,
                                      bytes_accessed=0),
    )(x)


# ---------------------------------------------------------------------------
# Fallback path: tuned streaming copy (when the caller cannot donate x).
# ---------------------------------------------------------------------------
def _identity_copy_kernel(x_ref, o_ref):
    # Pass-through of the current VMEM tile (unmasked, lane-dense vst).
    # On v7x, if this copy ever becomes vst-slot-limited, it could be replaced
    # by a pl.ANY + pltpu.make_async_copy (pure-DMA) variant.
    o_ref[...] = x_ref[...]


def _sublane_align(itemsize):
    # Sub-32-bit dtypes pack along sublanes: f32 -> 8, bf16 -> 16, int8 -> 32.
    return max(8, 32 // int(itemsize))


def _lane_dense_2d(shape):
    """(rows, cols) view with cols a large multiple of 128, or None."""
    total = math.prod(shape)
    if total % _LANE != 0:
        return None  # cannot present a lane-dense view without padding
    cols = _LANE
    while cols * 2 <= _MAX_LANES and total % (cols * 2) == 0:
        cols *= 2
    return total // cols, cols


def _tile_and_vmem_budget():
    """Generation-aware (tile_bytes, scoped_vmem_limit_bytes)."""
    try:
        cap = int(pltpu.get_tpu_info().vmem_capacity_bytes)
    except Exception:
        cap = 64 << 20  # conservative default: v7x per-TensorCore VMEM
    # in + out, double-buffered => 4 tile-sized buffers; tile = cap/8 keeps the
    # buffers at cap/2, under a scoped limit of 3/4 * cap (headroom for
    # Mosaic's internal scratch).  v5e/v6e: 16 MiB tiles, 96 MiB limit.
    # v7x: 8 MiB tiles, 48 MiB limit.
    return cap // 8, (cap * 3) // 4


@jax.jit
def clsf_model_forward_copy(x):
    """ClsfModel.forward (identity) as a tuned streaming copy (no donation)."""
    orig_shape = x.shape
    dims = _lane_dense_2d(orig_shape)
    if dims is None:
        # A sub-128-lane output spec would hit masked vst.msk partial stores
        # (the biggest measured writeback penalty); since the op is identity,
        # skip the kernel entirely in that case.
        return x
    rows, cols = dims
    x2d = x.reshape(rows, cols)

    sub = _sublane_align(x.dtype.itemsize)
    tile_bytes, vmem_limit = _tile_and_vmem_budget()
    bytes_per_row = cols * x.dtype.itemsize
    rows_per_tile = max(1, tile_bytes // bytes_per_row)
    if rows <= rows_per_tile or rows < sub:
        block_rows = rows  # single block == full array extent (always legal)
    else:
        block_rows = max(sub, (rows_per_tile // sub) * sub)

    grid_steps = pl.cdiv(rows, block_rows)
    # Only CORE_PARALLEL reliably splits a grid axis across v7x's two
    # TensorCores (plain "parallel" barely changes codegen); use it whenever
    # the copy can actually be halved, stay neutral otherwise.
    if grid_steps >= 2 and grid_steps % 2 == 0:
        row_semantics = pltpu.CORE_PARALLEL
    else:
        row_semantics = "parallel"

    out2d = pl.pallas_call(
        _identity_copy_kernel,
        out_shape=jax.ShapeDtypeStruct((rows, cols), x.dtype),
        grid=(grid_steps,),
        in_specs=[pl.BlockSpec((block_rows, cols), lambda i: (i, 0))],
        out_specs=pl.BlockSpec((block_rows, cols), lambda i: (i, 0)),
        compiler_params=pltpu.CompilerParams(
            dimension_semantics=(row_semantics,),
            vmem_limit_bytes=int(vmem_limit),
        ),
        cost_estimate=pl.CostEstimate(
            flops=0,
            transcendentals=0,
            bytes_accessed=2 * rows * cols * x.dtype.itemsize,
        ),
    )(x2d)
    return out2d.reshape(orig_shape)


if __name__ == "__main__":
    key = jax.random.PRNGKey(0)
    x = jax.random.normal(key, (2, 4, 16, 16), dtype=jnp.float32)
    # Saved BEFORE the donating call: x's device buffer is consumed by it.
    x_host = np.asarray(x)

    # Fallback (non-donating) streaming-copy path.
    y_copy = clsf_model_forward_copy(x)
    jax.block_until_ready(y_copy)
    assert y_copy.shape == x.shape and y_copy.dtype == x.dtype
    assert np.array_equal(np.asarray(y_copy), x_host)

    # Primary (donating, zero-HBM-traffic) path.  x is consumed here.
    y = clsf_model_forward(x)
    jax.block_until_ready(y)
    assert y.shape == x_host.shape and y.dtype == x_host.dtype
    assert np.array_equal(np.asarray(y), x_host)

    print("KERNEL_OK")
</pallas_src>

<mosaic_0001>
module attributes {stable_mosaic.version = 11 : i64} {
  func.func @_identity_copy_kernel(%arg0: i32, %arg1: memref<2x1024xf32, #tpu.memory_space<vmem>>, %arg2: memref<2x1024xf32, #tpu.memory_space<vmem>>) attributes {dimension_semantics = [#tpu.dimension_semantics<parallel>], iteration_bounds = array<i64: 1>, scalar_prefetch = 0 : i64, scratch_operands = 0 : i64, tpu.core_type = #tpu.core_type<tc>, window_params = [{transform_indices = @transform_0, window_bounds = array<i64: 2, 1024>}, {transform_indices = @transform_1, window_bounds = array<i64: 2, 1024>}]} {
    %c0 = arith.constant 0 : index
    %c0_0 = arith.constant 0 : index
    %0 = vector.load %arg1[%c0, %c0_0] : memref<2x1024xf32, #tpu.memory_space<vmem>>, vector<2x1024xf32>
    %c0_1 = arith.constant 0 : index
    %c0_2 = arith.constant 0 : index
    %1 = vector.load %arg2[%c0_1, %c0_2] : memref<2x1024xf32, #tpu.memory_space<vmem>>, vector<2x1024xf32>
    tpu.vector_store %arg2[%c0_1, %c0_2], %0 {strides = array<i32>} : memref<2x1024xf32, #tpu.memory_space<vmem>>, vector<2x1024xf32>,
    return
  }
  func.func @transform_0(%arg0: i32) -> (i32, i32) {
    %c0_i32 = arith.constant 0 : i32
    %c0_i32_0 = arith.constant 0 : i32
    return %arg0, %c0_i32 : i32, i32
  }
  func.func @transform_1(%arg0: i32) -> (i32, i32) {
    %c0_i32 = arith.constant 0 : i32
    %c0_i32_0 = arith.constant 0 : i32
    return %arg0, %c0_i32 : i32, i32
  }
}

</mosaic_0001>

<llo_original>
// kernel: clsf_model_forward_copy.1
$region0: #{clsf_model_forward_copy.1}
  #allocation0 [shape = 'u32[]', space=smem, size = 0x4, offset = 0x4, fixed_abs, tag = 'smem constant byte address 0x4 - core index']
  #allocation1 [shape = 'u32[144,128]{1,0:T(1,128)}', space=vmem, size = 0x12000, scoped, tag = 'internal scratch']
  %s0 = inlined_call_operand.vmem [shape: f32[2,1024], index: 0, kind: input, shape index: {}]
  %s1 = inlined_call_operand.vmem [shape: f32[2,1024], index: 1, kind: output, shape index: {}]
  %s2 = sld [smem:[#allocation0]]
  $region14: #{clsf_model_forward_copy.1} parent=0
    _
  %s4 = ssub.s32 1, %s2
  %s5 = scalar_select 0, %s4, %s2
  // Predicated region
  $region2: #{clsf_model_forward_copy.1} parent=0 // pred_check
    _
  $region3: #{clsf_model_forward_copy.1} parent=0 // pred_check_branch
    %7 = sbr.rel (0) target = $region5
  $region4: #{clsf_model_forward_copy.1} parent=0 // pred_region
    _
  $region5: #{clsf_model_forward_copy.1} parent=0 // pred_fallthru
    _
  %v8 = vld [vmem:[%s0] sm:$0xff]
  %v9 = vld [vmem:[%s0 + $0x8] sm:$0xff]
  %10 = vst [vmem:[%s1] sm:$0xff] %v8
  %11 = vst [vmem:[%s1 + $0x8] sm:$0xff] %v9
  // Predicated region
  $region6: #{clsf_model_forward_copy.1} parent=0 // pred_check
    _
  $region7: #{clsf_model_forward_copy.1} parent=0 // pred_check_branch
    %13 = sbr.rel (0) target = $region9
  $region8: #{clsf_model_forward_copy.1} parent=0 // pred_region
    _
  $region9: #{clsf_model_forward_copy.1} parent=0 // pred_fallthru
    _
  // Predicated region
  $region10: #{clsf_model_forward_copy.1} parent=0 // pred_check
    _
  $region11: #{clsf_model_forward_copy.1} parent=0 // pred_check_branch
    %15 = sbr.rel (0) target = $region13
  $region12: #{clsf_model_forward_copy.1} parent=0 // pred_region
    _
  $region13: #{clsf_model_forward_copy.1} parent=0 // pred_fallthru
    _

</llo_original>
